<compile_context>
chip_gen: v6e
topology: v6e:2x2x1
jax: 0.10.0
libtpu: 0.0.40
codegen_flags: <defaults>
</compile_context>

<pallas_src>
import functools

import jax
import jax.numpy as jnp
from jax import lax
from jax.experimental import pallas as pl
from jax.experimental.pallas import tpu as pltpu


def _resblock_kernel(xpad_ref, w_ref, b_ref, out_ref, *, K, Wp, Q, pad):
    """Per-image residual conv block: out = x + conv2(x) + b2.

    xpad_ref: (C, Win) f32   zero-padded image; channels on sublanes, the
                             flattened (Hp*Wp) padded plane on lanes (plus
                             zero lane-padding up to Win).
    w_ref   : (K*K, C, C) bf16  conv2 weight, tap-major: w_ref[kh*K+kw] is the
                                (C_out, C_in) matrix of tap (kh, kw).
    b_ref   : (C, 1) f32     conv2 bias (broadcast over lanes).
    out_ref : (C, Q) f32     result at flat positions q = h*Wp + w; columns
                             with (q % Wp) >= W are garbage, cropped by the
                             wrapper.
    """
    # Single load of the padded plane; one bf16 cast feeds all K*K taps.
    x_f32 = xpad_ref[...]                      # (C, Win) f32
    x_bf16 = x_f32.astype(jnp.bfloat16)

    acc = jnp.zeros(out_ref.shape, jnp.float32)
    for kh in range(K):                         # K*K static (unrolled) taps
        for kw in range(K):
            d = kh * Wp + kw
            acc = acc + jnp.dot(w_ref[kh * K + kw],
                                x_bf16[:, d:d + Q],
                                preferred_element_type=jnp.float32)

    # Exact f32 residual = the centre slice of the padded image.
    r0 = pad * Wp + pad
    res = x_f32[:, r0:r0 + Q]
    # Bias + residual folded into a single f32 VPU pass.
    out_ref[...] = res + acc + b_ref[...]


@functools.partial(jax.jit, static_argnames=("kernel_size",))
def resblock_forward(x_nchw, w1, b1, w2, b2, *, kernel_size):
    """x_nchw: (N, C, H, W); w*: (C_out, C_in, K, K); b*: (C,). Returns NCHW.

    Only conv2 affects the module output; w1/b1 (and the BN parameters) are
    accepted for interface parity but unused (dead branch, see header).
    """
    del w1, b1
    n, c, h, w = x_nchw.shape
    k = kernel_size
    assert k % 2 == 1, "padding='same' implemented for odd kernel sizes"
    pad = (k - 1) // 2
    hp, wp = h + 2 * pad, w + 2 * pad
    q = h * wp                              # lane-dense output width per image
    need = hp * wp + (k - 1)                # max in-kernel slice end
    win = ((need + 127) // 128) * 128       # round lane width up to 128

    # NCHW -> zero-pad spatial -> flatten (Hp, Wp) onto lanes.  No transposes.
    xp = jnp.pad(x_nchw.astype(jnp.float32),
                 ((0, 0), (0, 0), (pad, pad), (pad, pad)))
    xp_flat = xp.reshape(n, c, hp * wp)
    xp_flat = jnp.pad(xp_flat, ((0, 0), (0, 0), (0, win - hp * wp)))

    # conv2 weights tap-major (K*K, C_out, C_in), bf16 for the MXU.
    w_taps = jnp.transpose(w2, (2, 3, 0, 1)).reshape(k * k, c, c)
    w_taps = w_taps.astype(jnp.bfloat16)
    b_col = b2.reshape(c, 1).astype(jnp.float32)

    kernel = functools.partial(_resblock_kernel, K=k, Wp=wp, Q=q, pad=pad)

    out_flat = pl.pallas_call(
        kernel,
        grid=(n,),
        in_specs=[
            pl.BlockSpec((None, c, win), lambda i: (i, 0, 0)),  # one image
            pl.BlockSpec((k * k, c, c), lambda i: (0, 0, 0)),   # conv2 weights
            pl.BlockSpec((c, 1), lambda i: (0, 0)),             # conv2 bias
        ],
        out_specs=pl.BlockSpec((None, c, q), lambda i: (i, 0, 0)),
        out_shape=jax.ShapeDtypeStruct((n, c, q), jnp.float32),
        compiler_params=pltpu.CompilerParams(
            dimension_semantics=("parallel",),
            vmem_limit_bytes=48 * 1024 * 1024),
        cost_estimate=pl.CostEstimate(
            flops=2 * n * k * k * c * c * q,
            transcendentals=0,
            bytes_accessed=4 * n * c * (win + q) + 2 * k * k * c * c + 4 * c),
    )(xp_flat, w_taps, b_col)

    # (N, C, H*Wp) -> (N, C, H, Wp) -> crop padded columns; already NCHW.
    return out_flat.reshape(n, c, h, wp)[:, :, :, :w]


def _reference(x_nchw, w2, b2):
    """Pure-JAX f32 reference of the module forward: x + conv2(x)."""
    conv2 = lax.conv_general_dilated(
        x_nchw, w2, window_strides=(1, 1), padding="SAME",
        dimension_numbers=("NCHW", "OIHW", "NCHW"),
        precision=lax.Precision.HIGHEST)
    return x_nchw + conv2 + b2.reshape(1, -1, 1, 1)


if __name__ == "__main__":
    N, C, H, W = 2, 4, 16, 16
    K = 3

    key = jax.random.PRNGKey(0)
    kx, k1w, k1b, k2w, k2b = jax.random.split(key, 5)
    x = jax.random.normal(kx, (N, C, H, W), dtype=jnp.float32)
    w1 = 0.1 * jax.random.normal(k1w, (C, C, K, K), dtype=jnp.float32)
    b1 = 0.1 * jax.random.normal(k1b, (C,), dtype=jnp.float32)
    w2 = 0.1 * jax.random.normal(k2w, (C, C, K, K), dtype=jnp.float32)
    b2 = 0.1 * jax.random.normal(k2b, (C,), dtype=jnp.float32)

    out = jax.block_until_ready(
        resblock_forward(x, w1, b1, w2, b2, kernel_size=K))

    ref = jax.block_until_ready(_reference(x, w2, b2))
    assert out.shape == (N, C, H, W)
    err = float(jnp.max(jnp.abs(out - ref)))
    # bf16 MXU operands (f32 accumulate + exact f32 residual) -> loose atol.
    assert err < 5e-2, f"max abs err = {err}"

    print("KERNEL_OK")
</pallas_src>

<mosaic_0001>
module attributes {stable_mosaic.version = 11 : i64} {
  func.func @_resblock_kernel(%arg0: i32, %arg1: memref<1x4x384xf32, #tpu.memory_space<vmem>>, %arg2: memref<9x4x4xbf16, #tpu.memory_space<vmem>>, %arg3: memref<4x1xf32, #tpu.memory_space<vmem>>, %arg4: memref<1x4x288xf32, #tpu.memory_space<vmem>>) attributes {dimension_semantics = [#tpu.dimension_semantics<parallel>], iteration_bounds = array<i64: 2>, scalar_prefetch = 0 : i64, scratch_operands = 0 : i64, tpu.core_type = #tpu.core_type<tc>, window_params = [{transform_indices = @transform_0, window_bounds = array<i64: 1, 4, 384>}, {pipeline_mode = #tpu.pipeline_mode<synchronous>, transform_indices = @transform_1, window_bounds = array<i64: 9, 4, 4>}, {pipeline_mode = #tpu.pipeline_mode<synchronous>, transform_indices = @transform_2, window_bounds = array<i64: 4, 1>}, {transform_indices = @transform_3, window_bounds = array<i64: 1, 4, 288>}]} {
    %c0 = arith.constant 0 : index
    %c0_0 = arith.constant 0 : index
    %c0_1 = arith.constant 0 : index
    %0 = vector.load %arg1[%c0, %c0_0, %c0_1] : memref<1x4x384xf32, #tpu.memory_space<vmem>>, vector<1x4x384xf32>
    %1 = vector.shape_cast %0 : vector<1x4x384xf32> to vector<4x384xf32>
    %2 = arith.truncf %1 : vector<4x384xf32> to vector<4x384xbf16>
    %cst = arith.constant 0.000000e+00 : f32
    %3 = vector.broadcast %cst : f32 to vector<4x288xf32>
    %c0_2 = arith.constant 0 : index
    %c0_3 = arith.constant 0 : index
    %c0_4 = arith.constant 0 : index
    %4 = vector.load %arg2[%c0_2, %c0_3, %c0_4] : memref<9x4x4xbf16, #tpu.memory_space<vmem>>, vector<1x4x4xbf16>
    %5 = vector.shape_cast %4 : vector<1x4x4xbf16> to vector<4x4xbf16>
    %6 = vector.extract_strided_slice %2 {offsets = [0, 0], sizes = [4, 288], strides = [1, 1]} : vector<4x384xbf16> to vector<4x288xbf16>
    %cst_5 = arith.constant dense<0.000000e+00> : vector<4x288xf32>
    %7 = tpu.matmul %5, %6, %cst_5 {dimension_numbers = #tpu.dot_dimension_numbers<[1], [0], [0], [1], [0, 0, 1, 1], [], []>} : vector<4x4xbf16>, vector<4x288xbf16>, vector<4x288xf32> -> vector<4x288xf32>
    %8 = arith.addf %3, %7 : vector<4x288xf32>
    %c1 = arith.constant 1 : index
    %c0_6 = arith.constant 0 : index
    %c0_7 = arith.constant 0 : index
    %9 = vector.load %arg2[%c1, %c0_6, %c0_7] : memref<9x4x4xbf16, #tpu.memory_space<vmem>>, vector<1x4x4xbf16>
    %10 = vector.shape_cast %9 : vector<1x4x4xbf16> to vector<4x4xbf16>
    %11 = vector.extract_strided_slice %2 {offsets = [0, 1], sizes = [4, 288], strides = [1, 1]} : vector<4x384xbf16> to vector<4x288xbf16>
    %cst_8 = arith.constant dense<0.000000e+00> : vector<4x288xf32>
    %12 = tpu.matmul %10, %11, %cst_8 {dimension_numbers = #tpu.dot_dimension_numbers<[1], [0], [0], [1], [0, 0, 1, 1], [], []>} : vector<4x4xbf16>, vector<4x288xbf16>, vector<4x288xf32> -> vector<4x288xf32>
    %13 = arith.addf %8, %12 : vector<4x288xf32>
    %c2 = arith.constant 2 : index
    %c0_9 = arith.constant 0 : index
    %c0_10 = arith.constant 0 : index
    %14 = vector.load %arg2[%c2, %c0_9, %c0_10] : memref<9x4x4xbf16, #tpu.memory_space<vmem>>, vector<1x4x4xbf16>
    %15 = vector.shape_cast %14 : vector<1x4x4xbf16> to vector<4x4xbf16>
    %16 = vector.extract_strided_slice %2 {offsets = [0, 2], sizes = [4, 288], strides = [1, 1]} : vector<4x384xbf16> to vector<4x288xbf16>
    %cst_11 = arith.constant dense<0.000000e+00> : vector<4x288xf32>
    %17 = tpu.matmul %15, %16, %cst_11 {dimension_numbers = #tpu.dot_dimension_numbers<[1], [0], [0], [1], [0, 0, 1, 1], [], []>} : vector<4x4xbf16>, vector<4x288xbf16>, vector<4x288xf32> -> vector<4x288xf32>
    %18 = arith.addf %13, %17 : vector<4x288xf32>
    %c3 = arith.constant 3 : index
    %c0_12 = arith.constant 0 : index
    %c0_13 = arith.constant 0 : index
    %19 = vector.load %arg2[%c3, %c0_12, %c0_13] : memref<9x4x4xbf16, #tpu.memory_space<vmem>>, vector<1x4x4xbf16>
    %20 = vector.shape_cast %19 : vector<1x4x4xbf16> to vector<4x4xbf16>
    %21 = vector.extract_strided_slice %2 {offsets = [0, 18], sizes = [4, 288], strides = [1, 1]} : vector<4x384xbf16> to vector<4x288xbf16>
    %cst_14 = arith.constant dense<0.000000e+00> : vector<4x288xf32>
    %22 = tpu.matmul %20, %21, %cst_14 {dimension_numbers = #tpu.dot_dimension_numbers<[1], [0], [0], [1], [0, 0, 1, 1], [], []>} : vector<4x4xbf16>, vector<4x288xbf16>, vector<4x288xf32> -> vector<4x288xf32>
    %23 = arith.addf %18, %22 : vector<4x288xf32>
    %c4 = arith.constant 4 : index
    %c0_15 = arith.constant 0 : index
    %c0_16 = arith.constant 0 : index
    %24 = vector.load %arg2[%c4, %c0_15, %c0_16] : memref<9x4x4xbf16, #tpu.memory_space<vmem>>, vector<1x4x4xbf16>
    %25 = vector.shape_cast %24 : vector<1x4x4xbf16> to vector<4x4xbf16>
    %26 = vector.extract_strided_slice %2 {offsets = [0, 19], sizes = [4, 288], strides = [1, 1]} : vector<4x384xbf16> to vector<4x288xbf16>
    %cst_17 = arith.constant dense<0.000000e+00> : vector<4x288xf32>
    %27 = tpu.matmul %25, %26, %cst_17 {dimension_numbers = #tpu.dot_dimension_numbers<[1], [0], [0], [1], [0, 0, 1, 1], [], []>} : vector<4x4xbf16>, vector<4x288xbf16>, vector<4x288xf32> -> vector<4x288xf32>
    %28 = arith.addf %23, %27 : vector<4x288xf32>
    %c5 = arith.constant 5 : index
    %c0_18 = arith.constant 0 : index
    %c0_19 = arith.constant 0 : index
    %29 = vector.load %arg2[%c5, %c0_18, %c0_19] : memref<9x4x4xbf16, #tpu.memory_space<vmem>>, vector<1x4x4xbf16>
    %30 = vector.shape_cast %29 : vector<1x4x4xbf16> to vector<4x4xbf16>
    %31 = vector.extract_strided_slice %2 {offsets = [0, 20], sizes = [4, 288], strides = [1, 1]} : vector<4x384xbf16> to vector<4x288xbf16>
    %cst_20 = arith.constant dense<0.000000e+00> : vector<4x288xf32>
    %32 = tpu.matmul %30, %31, %cst_20 {dimension_numbers = #tpu.dot_dimension_numbers<[1], [0], [0], [1], [0, 0, 1, 1], [], []>} : vector<4x4xbf16>, vector<4x288xbf16>, vector<4x288xf32> -> vector<4x288xf32>
    %33 = arith.addf %28, %32 : vector<4x288xf32>
    %c6 = arith.constant 6 : index
    %c0_21 = arith.constant 0 : index
    %c0_22 = arith.constant 0 : index
    %34 = vector.load %arg2[%c6, %c0_21, %c0_22] : memref<9x4x4xbf16, #tpu.memory_space<vmem>>, vector<1x4x4xbf16>
    %35 = vector.shape_cast %34 : vector<1x4x4xbf16> to vector<4x4xbf16>
    %36 = vector.extract_strided_slice %2 {offsets = [0, 36], sizes = [4, 288], strides = [1, 1]} : vector<4x384xbf16> to vector<4x288xbf16>
    %cst_23 = arith.constant dense<0.000000e+00> : vector<4x288xf32>
    %37 = tpu.matmul %35, %36, %cst_23 {dimension_numbers = #tpu.dot_dimension_numbers<[1], [0], [0], [1], [0, 0, 1, 1], [], []>} : vector<4x4xbf16>, vector<4x288xbf16>, vector<4x288xf32> -> vector<4x288xf32>
    %38 = arith.addf %33, %37 : vector<4x288xf32>
    %c7 = arith.constant 7 : index
    %c0_24 = arith.constant 0 : index
    %c0_25 = arith.constant 0 : index
    %39 = vector.load %arg2[%c7, %c0_24, %c0_25] : memref<9x4x4xbf16, #tpu.memory_space<vmem>>, vector<1x4x4xbf16>
    %40 = vector.shape_cast %39 : vector<1x4x4xbf16> to vector<4x4xbf16>
    %41 = vector.extract_strided_slice %2 {offsets = [0, 37], sizes = [4, 288], strides = [1, 1]} : vector<4x384xbf16> to vector<4x288xbf16>
    %cst_26 = arith.constant dense<0.000000e+00> : vector<4x288xf32>
    %42 = tpu.matmul %40, %41, %cst_26 {dimension_numbers = #tpu.dot_dimension_numbers<[1], [0], [0], [1], [0, 0, 1, 1], [], []>} : vector<4x4xbf16>, vector<4x288xbf16>, vector<4x288xf32> -> vector<4x288xf32>
    %43 = arith.addf %38, %42 : vector<4x288xf32>
    %c8 = arith.constant 8 : index
    %c0_27 = arith.constant 0 : index
    %c0_28 = arith.constant 0 : index
    %44 = vector.load %arg2[%c8, %c0_27, %c0_28] : memref<9x4x4xbf16, #tpu.memory_space<vmem>>, vector<1x4x4xbf16>
    %45 = vector.shape_cast %44 : vector<1x4x4xbf16> to vector<4x4xbf16>
    %46 = vector.extract_strided_slice %2 {offsets = [0, 38], sizes = [4, 288], strides = [1, 1]} : vector<4x384xbf16> to vector<4x288xbf16>
    %cst_29 = arith.constant dense<0.000000e+00> : vector<4x288xf32>
    %47 = tpu.matmul %45, %46, %cst_29 {dimension_numbers = #tpu.dot_dimension_numbers<[1], [0], [0], [1], [0, 0, 1, 1], [], []>} : vector<4x4xbf16>, vector<4x288xbf16>, vector<4x288xf32> -> vector<4x288xf32>
    %48 = arith.addf %43, %47 : vector<4x288xf32>
    %49 = vector.extract_strided_slice %1 {offsets = [0, 19], sizes = [4, 288], strides = [1, 1]} : vector<4x384xf32> to vector<4x288xf32>
    %50 = arith.addf %49, %48 : vector<4x288xf32>
    %c0_30 = arith.constant 0 : index
    %c0_31 = arith.constant 0 : index
    %51 = vector.load %arg3[%c0_30, %c0_31] : memref<4x1xf32, #tpu.memory_space<vmem>>, vector<4x1xf32>
    %52 = vector.broadcast %51 : vector<4x1xf32> to vector<4x288xf32>
    %53 = arith.addf %50, %52 : vector<4x288xf32>
    %c0_32 = arith.constant 0 : index
    %c0_33 = arith.constant 0 : index
    %c0_34 = arith.constant 0 : index
    %54 = vector.load %arg4[%c0_32, %c0_33, %c0_34] : memref<1x4x288xf32, #tpu.memory_space<vmem>>, vector<1x4x288xf32>
    %55 = vector.shape_cast %54 : vector<1x4x288xf32> to vector<4x288xf32>
    %56 = vector.shape_cast %53 : vector<4x288xf32> to vector<1x4x288xf32>
    tpu.vector_store %arg4[%c0_32, %c0_33, %c0_34], %56 {strides = array<i32>} : memref<1x4x288xf32, #tpu.memory_space<vmem>>, vector<1x4x288xf32>,
    return
  }
  func.func @transform_0(%arg0: i32) -> (i32, i32, i32) {
    %c0_i32 = arith.constant 0 : i32
    %c0_i32_0 = arith.constant 0 : i32
    %c0_i32_1 = arith.constant 0 : i32
    return %arg0, %c0_i32, %c0_i32_0 : i32, i32, i32
  }
  func.func @transform_1(%arg0: i32) -> (i32, i32, i32) {
    %c0_i32 = arith.constant 0 : i32
    %c0_i32_0 = arith.constant 0 : i32
    %c0_i32_1 = arith.constant 0 : i32
    %c0_i32_2 = arith.constant 0 : i32
    return %c0_i32, %c0_i32_0, %c0_i32_1 : i32, i32, i32
  }
  func.func @transform_2(%arg0: i32) -> (i32, i32) {
    %c0_i32 = arith.constant 0 : i32
    %c0_i32_0 = arith.constant 0 : i32
    %c0_i32_1 = arith.constant 0 : i32
    return %c0_i32, %c0_i32_0 : i32, i32
  }
  func.func @transform_3(%arg0: i32) -> (i32, i32, i32) {
    %c0_i32 = arith.constant 0 : i32
    %c0_i32_0 = arith.constant 0 : i32
    %c0_i32_1 = arith.constant 0 : i32
    return %arg0, %c0_i32, %c0_i32_0 : i32, i32, i32
  }
}

</mosaic_0001>

<llo_original>
// kernel: resblock_forward.1
$region0: #{resblock_forward.1}
  #allocation0 [shape = 'u32[]', space=smem, size = 0x4, offset = 0x4, fixed_abs, tag = 'smem constant byte address 0x4 - core index']
  #allocation1 [shape = 'u32[144,128]{1,0:T(1,128)}', space=vmem, size = 0x12000, scoped, tag = 'internal scratch']
  %s0 = inlined_call_operand.vmem [shape: f32[2,4,384], index: 0, kind: input, shape index: {}]
  %s1 = inlined_call_operand.vmem [shape: bf16[9,4,4], index: 1, kind: input, shape index: {}]
  %s2 = inlined_call_operand.vmem [shape: f32[4,1], index: 2, kind: input, shape index: {}]
  %s3 = inlined_call_operand.vmem [shape: f32[2,4,288], index: 3, kind: output, shape index: {}]
  %s4 = sld [smem:[#allocation0]]
  $region45: #{resblock_forward.1} parent=0
    _
  %s6 = ssub.s32 1, %s4
  %s7 = scalar_select 0, %s6, %s4
  loop: start=0, step=1, limit=4
  $region2: #{resblock_forward.1} parent=0 // loop_pre_header
    _
  $region3: #{resblock_forward.1} parent=0 // loop_header
    %s9 = sphi 0, %s13
    %p10 = scmp.ge.s32.totalorder %s9, 4
    %s19 = sphi 0, %s21
    %s22 = sphi 0, %s19
    %s23 = sphi 0, %s22
    %s39 = sphi 0, %s23
    %s43 = sphi 0, %s43
    %s45 = sphi 0, %s43
    %s46 = sphi 0, %s45
    %s60 = sphi 0, %s46
    %s64 = sphi 0, %s64
    %s66 = sphi 0, %s64
    %s67 = sphi 0, %s66
    %s81 = sphi 0, %s67
    %s87 = sphi 0, %s89
    %s90 = sphi 0, %s87
    %s91 = sphi 0, %s90
    %s107 = sphi 0, %s91
  $region4: #{resblock_forward.1} parent=0 // loop_header_branch
    %12 = sbr.rel (%p10) target = $region8
  $region5: #{resblock_forward.1} parent=0 // loop_body
    %s14 = ssub.s32 %s9, 1
    %s15 = ssub.s32 %s9, 2
    %s16 = sadd.s32 %s9, 1
    %s17 = ssub.s32 %s9, %s16
    %p18 = scmp.eq.s32.totalorder %s17, 0
    %s20 = sadd.s32 %s19, 1
    %s21 = scalar_select %p18, %s19, %s20
    %p24 = pneg %p18
    %p25 = scmp.eq.s32.totalorder %s9, 1
    %p26 = por %p24, %p25
    %p27 = scmp.ne.s32.totalorder %s19, %s22
    %p28 = scmp.eq.s32.totalorder %s9, 0
    %p29 = por %p27, %p28
    %p30 = scmp.ne.s32.totalorder %s19, %s22
    %p31 = scmp.eq.s32.totalorder %s14, 1
    %p32 = por %p30, %p31
    %p33 = scmp.ne.s32.totalorder %s22, %s23
    %p34 = scmp.eq.s32.totalorder %s14, 0
    %p35 = por %p33, %p34
    %p36 = scmp.ne.s32.totalorder %s22, %s23
    %p37 = scmp.eq.s32.totalorder %s15, 1
    %p38 = por %p36, %p37
    %p40 = scmp.ne.s32.totalorder %s23, %s39
    %p41 = scmp.eq.s32.totalorder %s15, 0
    %p42 = por %p40, %p41
    %s44 = sadd.s32 %s43, 1
    %p47 = scmp.eq.s32.totalorder %s9, 1
    %p48 = scmp.ne.s32.totalorder %s43, %s45
    %p49 = scmp.eq.s32.totalorder %s9, 0
    %p50 = por %p48, %p49
    %p51 = scmp.ne.s32.totalorder %s43, %s45
    %p52 = scmp.eq.s32.totalorder %s14, 1
    %p53 = por %p51, %p52
    %p54 = scmp.ne.s32.totalorder %s45, %s46
    %p55 = scmp.eq.s32.totalorder %s14, 0
    %p56 = por %p54, %p55
    %p57 = scmp.ne.s32.totalorder %s45, %s46
    %p58 = scmp.eq.s32.totalorder %s15, 1
    %p59 = por %p57, %p58
    %p61 = scmp.ne.s32.totalorder %s46, %s60
    %p62 = scmp.eq.s32.totalorder %s15, 0
    %p63 = por %p61, %p62
    %s65 = sadd.s32 %s64, 1
    %p68 = scmp.eq.s32.totalorder %s9, 1
    %p69 = scmp.ne.s32.totalorder %s64, %s66
    %p70 = scmp.eq.s32.totalorder %s9, 0
    %p71 = por %p69, %p70
    %p72 = scmp.ne.s32.totalorder %s64, %s66
    %p73 = scmp.eq.s32.totalorder %s14, 1
    %p74 = por %p72, %p73
    %p75 = scmp.ne.s32.totalorder %s66, %s67
    %p76 = scmp.eq.s32.totalorder %s14, 0
    %p77 = por %p75, %p76
    %p78 = scmp.ne.s32.totalorder %s66, %s67
    %p79 = scmp.eq.s32.totalorder %s15, 1
    %p80 = por %p78, %p79
    %p82 = scmp.ne.s32.totalorder %s67, %s81
    %p83 = scmp.eq.s32.totalorder %s15, 0
    %p84 = por %p82, %p83
    %s85 = ssub.s32 %s9, %s16
    %p86 = scmp.eq.s32.totalorder %s85, 0
    %s88 = sadd.s32 %s87, 1
    %s89 = scalar_select %p86, %s87, %s88
    %p92 = pneg %p86
    %p93 = scmp.eq.s32.totalorder %s9, 1
    %p94 = por %p92, %p93
    %p95 = scmp.ne.s32.totalorder %s87, %s90
    %p96 = scmp.eq.s32.totalorder %s9, 0
    %p97 = por %p95, %p96
    %p98 = scmp.ne.s32.totalorder %s87, %s90
    %p99 = scmp.eq.s32.totalorder %s14, 1
    %p100 = por %p98, %p99
    %p101 = scmp.ne.s32.totalorder %s90, %s91
    %p102 = scmp.eq.s32.totalorder %s14, 0
    %p103 = por %p101, %p102
    %p104 = scmp.ne.s32.totalorder %s90, %s91
    %p105 = scmp.eq.s32.totalorder %s15, 1
    %p106 = por %p104, %p105
    %p108 = scmp.ne.s32.totalorder %s91, %s107
    %p109 = scmp.eq.s32.totalorder %s15, 0
    %p110 = por %p108, %p109
    %p111 = scmp.le.s32.totalorder 1, %s9
    %p112 = scmp.lt.s32.totalorder %s9, 3
    %p113 = pnand %p111, %p112
    %p114 = pneg %p113
    // Predicated region
    $region9: #{resblock_forward.1} parent=5 // pred_check
      _
    $region10: #{resblock_forward.1} parent=5 // pred_check_branch
      %116 = sbr.rel (%p113) target = $region12
    $region11: #{resblock_forward.1} parent=5 // pred_region
      %s117 = ssub.s32 %s9, 1
      // Predicated region
      $region13: #{resblock_forward.1} parent=11 // pred_check
        %p118 = pneg %p56
      $region14: #{resblock_forward.1} parent=11 // pred_check_branch
        %120 = sbr.rel (%p118) target = $region16
      $region15: #{resblock_forward.1} parent=11 // pred_region
        _
      $region16: #{resblock_forward.1} parent=11 // pred_fallthru
        _
      // Predicated region
      $region17: #{resblock_forward.1} parent=11 // pred_check
        %p121 = pneg %p77
      $region18: #{resblock_forward.1} parent=11 // pred_check_branch
        %123 = sbr.rel (%p121) target = $region20
      $region19: #{resblock_forward.1} parent=11 // pred_region
        _
      $region20: #{resblock_forward.1} parent=11 // pred_fallthru
        _
    $region12: #{resblock_forward.1} parent=5 // pred_fallthru
      _
    %p124 = scmp.lt.s32.totalorder %s9, 2
    // Predicated region
    $region21: #{resblock_forward.1} parent=5 // pred_check
      %p125 = pneg %p124
    $region22: #{resblock_forward.1} parent=5 // pred_check_branch
      %127 = sbr.rel (%p125) target = $region24
    $region23: #{resblock_forward.1} parent=5 // pred_region
      // Predicated region
      $region25: #{resblock_forward.1} parent=23 // pred_check
        %p128 = pneg %p29
      $region26: #{resblock_forward.1} parent=23 // pred_check_branch
        %130 = sbr.rel (%p128) target = $region28
      $region27: #{resblock_forward.1} parent=23 // pred_region
        %p131 = scmp.lt.s32.totalorder %s9, 1
        %s132 = scalar_select %p131, %s9, 1
        %s133 = smul.addr %s132, 3
        %s134 = smul.addr %s133, 4
        %s135 = scalar_lea.vmem %s0, %s134
      $region28: #{resblock_forward.1} parent=23 // pred_fallthru
        _
    $region24: #{resblock_forward.1} parent=5 // pred_fallthru
      _
    %p136 = scmp.le.s32.totalorder 1, %s9
    %p137 = scmp.lt.s32.totalorder %s9, 3
    %p138 = pnand %p136, %p137
    %p139 = pneg %p138
    // Predicated region
    $region29: #{resblock_forward.1} parent=5 // pred_check
      _
    $region30: #{resblock_forward.1} parent=5 // pred_check_branch
      %141 = sbr.rel (%p138) target = $region32
    $region31: #{resblock_forward.1} parent=5 // pred_region
      %s142 = ssub.s32 %s9, 1
      %p143 = scmp.lt.s32.totalorder %s14, 1
      %s144 = scalar_select %p143, %s14, 1
      %s145 = smul.addr %s144, 3
      %s146 = smul.addr %s145, 4
      %s147 = scalar_lea.vmem %s0, %s146
      %p148 = pneg %p35
      %p149 = pneg %p32
      %p150 = pneg %p56
      %p151 = pneg %p53
      %p152 = pneg %p77
      %p153 = pneg %p74
      %p154 = pneg %p103
      %p155 = pneg %p100
      %p156 = scmp.lt.s32.totalorder %s14, 1
      %s157 = scalar_select %p156, %s14, 1
      %s158 = smul.addr %s157, 3
      %s159 = smul.addr %s158, 4
      %s160 = scalar_lea.vmem %s3, %s159
      %p161 = scmp.lt.s32.totalorder %s14, 1
      %s162 = scalar_select %p161, %s14, 1
      %s163 = smul.addr %s162, 3
      %s164 = smul.addr %s163, 4
      %s165 = scalar_lea.vmem %s0, %s164
      %p166 = scmp.lt.s32.totalorder %s14, 1
      %s167 = scalar_select %p166, %s14, 1
      %s168 = smul.addr %s167, 3
      %s169 = smul.addr %s168, 4
      %s170 = scalar_lea.vmem %s3, %s169
      %v172 = vld [vmem:[%s165] sm:$0xff]
      %v173 = vld [vmem:[%s165 + $0x8] sm:$0xf]
      %v175 = vcombine.high %v172, %v172
      %v177 = vpack.c.bf16 %v172, %v172
      %v178 = vpack.c.bf16 %v175, %v175
      %v179 = vpack.c.bf16 %v173, %v173
      %v180 = vld [vmem:[%s1] sm:$0x3]
      %s181 = scalar_lea.vmem %s1, 2
      %v182 = vld [vmem:[%s181] sm:$0x3]
      %186 = vrot.lane.b32.xlu0 %v177, 127
      %v187 = vpop.permute.xlu0 %186
      %188 = vrot.lane.b32.xlu0 %v178, 127
      %v189 = vpop.permute.xlu0 %188
      %190 = vrot.lane.b32.xlu0 %v179, 127
      %v191 = vpop.permute.xlu0 %190
      %vm192 = vcmask 1039360
      %v193 = vsel %vm192, %v187, %v189
      %v194 = vsel %vm192, %v189, %v191
      %vm195 = vcmask 31744
      %v197 = vsel %vm195, %v182, 0
      %vm199 = vcmask 1041408
      %v201 = vsel %vm199, %v193, 0
      %v204 = vsel %vm199, %v194, 0
      %v207 = vsel %vm199, %v191, 0
      %209 = vmatprep.subr.bf16.mxu0 0
      %210 = vmatpush1.bf16.msra.mxu0 0
      %211 = vmatprep.subr.bf16.mxu0 0
      %212 = vmatpush1.bf16.msra.mxu0 0
      %213 = vmatprep.subr.bf16.mxu0 0
      %214 = vmatpush1.bf16.msra.mxu0 0
      %215 = vmatprep.subr.bf16.mxu0 0
      %216 = vmatpush1.bf16.msra.mxu0 0
      %217 = vmatprep.subr.bf16.mxu0 0
      %218 = vmatpush1.bf16.msra.mxu0 0
      %219 = vmatprep.subr.bf16.mxu0 0
      %220 = vmatpush1.bf16.msra.mxu0 0
      %221 = vmatprep.subr.bf16.mxu0 0
      %222 = vmatpush1.bf16.msra.mxu0 0
      %223 = vmatprep.subr.bf16.mxu0 %v204
      %224 = vmatpush1.bf16.msra.mxu0 %v201
      %225 = vmatprep.subr.bf16.mxu0 0
      %226 = vmatpush2.bf16.msra.mxu0 0
      %227 = vmatprep.subr.bf16.mxu0 0
      %228 = vmatpush2.bf16.msra.mxu0 0
      %229 = vmatprep.subr.bf16.mxu0 0
      %230 = vmatpush2.bf16.msra.mxu0 0
      %231 = vmatprep.subr.bf16.mxu0 0
      %232 = vmatpush2.bf16.msra.mxu0 0
      %233 = vmatprep.subr.bf16.mxu0 0
      %234 = vmatpush2.bf16.msra.mxu0 0
      %235 = vmatprep.subr.bf16.mxu0 0
      %236 = vmatpush2.bf16.msra.mxu0 0
      %237 = vmatprep.subr.bf16.mxu0 0
      %238 = vmatpush2.bf16.msra.mxu0 0
      %239 = vmatprep.subr.bf16.mxu0 0
      %240 = vmatpush2.bf16.msra.mxu0 0
      %241 = vmatprep.mubr.bf16.mxu0 0
      %242 = vmatmul.mubr.bf16.gmra.mxu0 %v197
      %v243 = vpop.f32.mrf.mxu0
      %v244 = vadd.f32 0.0, %v243
      %v245 = vpop.f32.mrf.mxu0
      %v246 = vadd.f32 0.0, %v245
      %v247 = vpop.f32.mrf.mxu0
      %v248 = vpop.f32.mrf.mxu0
      %249 = vdwg.mxu0
      %250 = vmatprep.subr.bf16.mxu0 0
      %251 = vmatpush1.bf16.msra.mxu0 0
      %252 = vmatprep.subr.bf16.mxu0 0
      %253 = vmatpush1.bf16.msra.mxu0 0
      %254 = vmatprep.subr.bf16.mxu0 0
      %255 = vmatpush1.bf16.msra.mxu0 0
      %256 = vmatprep.subr.bf16.mxu0 0
      %257 = vmatpush1.bf16.msra.mxu0 0
      %258 = vmatprep.subr.bf16.mxu0 0
      %259 = vmatpush1.bf16.msra.mxu0 0
      %260 = vmatprep.subr.bf16.mxu0 0
      %261 = vmatpush1.bf16.msra.mxu0 0
      %262 = vmatprep.subr.bf16.mxu0 0
      %263 = vmatpush1.bf16.msra.mxu0 0
      %264 = vmatprep.subr.bf16.mxu0 0
      %265 = vmatpush1.bf16.msra.mxu0 %v207
      %266 = vmatprep.subr.bf16.mxu0 0
      %267 = vmatpush2.bf16.msra.mxu0 0
      %268 = vmatprep.subr.bf16.mxu0 0
      %269 = vmatpush2.bf16.msra.mxu0 0
      %270 = vmatprep.subr.bf16.mxu0 0
      %271 = vmatpush2.bf16.msra.mxu0 0
      %272 = vmatprep.subr.bf16.mxu0 0
      %273 = vmatpush2.bf16.msra.mxu0 0
      %274 = vmatprep.subr.bf16.mxu0 0
      %275 = vmatpush2.bf16.msra.mxu0 0
      %276 = vmatprep.subr.bf16.mxu0 0
      %277 = vmatpush2.bf16.msra.mxu0 0
      %278 = vmatprep.subr.bf16.mxu0 0
      %279 = vmatpush2.bf16.msra.mxu0 0
      %280 = vmatprep.subr.bf16.mxu0 0
      %281 = vmatpush2.bf16.msra.mxu0 0
      %282 = vmatprep.mubr.bf16.mxu0 0
      %283 = vmatmul.mubr.bf16.gmra.mxu0 %v197
      %v284 = vpop.f32.mrf.mxu0
      %v285 = vadd.f32 0.0, %v284
      %v286 = vpop.f32.mrf.mxu0
      %v287 = vpop.f32.mrf.mxu0
      %v288 = vpop.f32.mrf.mxu0
      %289 = vdwg.mxu0
      %v291 = vsel %vm195, %v180, 0
      %v294 = vsel %vm199, %v177, 0
      %v297 = vsel %vm199, %v178, 0
      %v300 = vsel %vm199, %v179, 0
      %302 = vmatprep.subr.bf16.mxu0 0
      %303 = vmatpush1.bf16.msra.mxu0 0
      %304 = vmatprep.subr.bf16.mxu0 0
      %305 = vmatpush1.bf16.msra.mxu0 0
      %306 = vmatprep.subr.bf16.mxu0 0
      %307 = vmatpush1.bf16.msra.mxu0 0
      %308 = vmatprep.subr.bf16.mxu0 0
      %309 = vmatpush1.bf16.msra.mxu0 0
      %310 = vmatprep.subr.bf16.mxu0 0
      %311 = vmatpush1.bf16.msra.mxu0 0
      %312 = vmatprep.subr.bf16.mxu0 0
      %313 = vmatpush1.bf16.msra.mxu0 0
      %314 = vmatprep.subr.bf16.mxu0 0
      %315 = vmatpush1.bf16.msra.mxu0 0
      %316 = vmatprep.subr.bf16.mxu0 %v297
      %317 = vmatpush1.bf16.msra.mxu0 %v294
      %318 = vmatprep.subr.bf16.mxu0 0
      %319 = vmatpush2.bf16.msra.mxu0 0
      %320 = vmatprep.subr.bf16.mxu0 0
      %321 = vmatpush2.bf16.msra.mxu0 0
      %322 = vmatprep.subr.bf16.mxu0 0
      %323 = vmatpush2.bf16.msra.mxu0 0
      %324 = vmatprep.subr.bf16.mxu0 0
      %325 = vmatpush2.bf16.msra.mxu0 0
      %326 = vmatprep.subr.bf16.mxu0 0
      %327 = vmatpush2.bf16.msra.mxu0 0
      %328 = vmatprep.subr.bf16.mxu0 0
      %329 = vmatpush2.bf16.msra.mxu0 0
      %330 = vmatprep.subr.bf16.mxu0 0
      %331 = vmatpush2.bf16.msra.mxu0 0
      %332 = vmatprep.subr.bf16.mxu0 0
      %333 = vmatpush2.bf16.msra.mxu0 0
      %334 = vmatprep.mubr.bf16.mxu0 0
      %335 = vmatmul.mubr.bf16.gmra.mxu0 %v291
      %v336 = vpop.f32.mrf.mxu0
      %v337 = vadd.f32 %v244, %v336
      %v338 = vpop.f32.mrf.mxu0
      %v339 = vadd.f32 %v246, %v338
      %v340 = vpop.f32.mrf.mxu0
      %v341 = vpop.f32.mrf.mxu0
      %342 = vdwg.mxu0
      %343 = vmatprep.subr.bf16.mxu0 0
      %344 = vmatpush1.bf16.msra.mxu0 0
      %345 = vmatprep.subr.bf16.mxu0 0
      %346 = vmatpush1.bf16.msra.mxu0 0
      %347 = vmatprep.subr.bf16.mxu0 0
      %348 = vmatpush1.bf16.msra.mxu0 0
      %349 = vmatprep.subr.bf16.mxu0 0
      %350 = vmatpush1.bf16.msra.mxu0 0
      %351 = vmatprep.subr.bf16.mxu0 0
      %352 = vmatpush1.bf16.msra.mxu0 0
      %353 = vmatprep.subr.bf16.mxu0 0
      %354 = vmatpush1.bf16.msra.mxu0 0
      %355 = vmatprep.subr.bf16.mxu0 0
      %356 = vmatpush1.bf16.msra.mxu0 0
      %357 = vmatprep.subr.bf16.mxu0 0
      %358 = vmatpush1.bf16.msra.mxu0 %v300
      %359 = vmatprep.subr.bf16.mxu0 0
      %360 = vmatpush2.bf16.msra.mxu0 0
      %361 = vmatprep.subr.bf16.mxu0 0
      %362 = vmatpush2.bf16.msra.mxu0 0
      %363 = vmatprep.subr.bf16.mxu0 0
      %364 = vmatpush2.bf16.msra.mxu0 0
      %365 = vmatprep.subr.bf16.mxu0 0
      %366 = vmatpush2.bf16.msra.mxu0 0
      %367 = vmatprep.subr.bf16.mxu0 0
      %368 = vmatpush2.bf16.msra.mxu0 0
      %369 = vmatprep.subr.bf16.mxu0 0
      %370 = vmatpush2.bf16.msra.mxu0 0
      %371 = vmatprep.subr.bf16.mxu0 0
      %372 = vmatpush2.bf16.msra.mxu0 0
      %373 = vmatprep.subr.bf16.mxu0 0
      %374 = vmatpush2.bf16.msra.mxu0 0
      %375 = vmatprep.mubr.bf16.mxu0 0
      %376 = vmatmul.mubr.bf16.gmra.mxu0 %v291
      %v377 = vpop.f32.mrf.mxu0
      %v378 = vadd.f32 %v285, %v377
      %v379 = vpop.f32.mrf.mxu0
      %v380 = vpop.f32.mrf.mxu0
      %v381 = vpop.f32.mrf.mxu0
      %382 = vdwg.mxu0
      %s383 = scalar_lea.vmem %s1, 4
      %v384 = vld [vmem:[%s383] sm:$0x3]
      %385 = vrot.lane.b32.xlu0 %v177, 126
      %v386 = vpop.permute.xlu0 %385
      %387 = vrot.lane.b32.xlu0 %v178, 126
      %v388 = vpop.permute.xlu0 %387
      %389 = vrot.lane.b32.xlu0 %v179, 126
      %v390 = vpop.permute.xlu0 %389
      %vm391 = vcmask 1031168
      %v392 = vsel %vm391, %v386, %v388
      %v393 = vsel %vm391, %v388, %v390
      %v395 = vsel %vm195, %v384, 0
      %v398 = vsel %vm199, %v392, 0
      %v401 = vsel %vm199, %v393, 0
      %v404 = vsel %vm199, %v390, 0
      %406 = vmatprep.subr.bf16.mxu0 0
      %407 = vmatpush1.bf16.msra.mxu0 0
      %408 = vmatprep.subr.bf16.mxu0 0
      %409 = vmatpush1.bf16.msra.mxu0 0
      %410 = vmatprep.subr.bf16.mxu0 0
      %411 = vmatpush1.bf16.msra.mxu0 0
      %412 = vmatprep.subr.bf16.mxu0 0
      %413 = vmatpush1.bf16.msra.mxu0 0
      %414 = vmatprep.subr.bf16.mxu0 0
      %415 = vmatpush1.bf16.msra.mxu0 0
      %416 = vmatprep.subr.bf16.mxu0 0
      %417 = vmatpush1.bf16.msra.mxu0 0
      %418 = vmatprep.subr.bf16.mxu0 0
      %419 = vmatpush1.bf16.msra.mxu0 0
      %420 = vmatprep.subr.bf16.mxu0 %v401
      %421 = vmatpush1.bf16.msra.mxu0 %v398
      %422 = vmatprep.subr.bf16.mxu0 0
      %423 = vmatpush2.bf16.msra.mxu0 0
      %424 = vmatprep.subr.bf16.mxu0 0
      %425 = vmatpush2.bf16.msra.mxu0 0
      %426 = vmatprep.subr.bf16.mxu0 0
      %427 = vmatpush2.bf16.msra.mxu0 0
      %428 = vmatprep.subr.bf16.mxu0 0
      %429 = vmatpush2.bf16.msra.mxu0 0
      %430 = vmatprep.subr.bf16.mxu0 0
      %431 = vmatpush2.bf16.msra.mxu0 0
      %432 = vmatprep.subr.bf16.mxu0 0
      %433 = vmatpush2.bf16.msra.mxu0 0
      %434 = vmatprep.subr.bf16.mxu0 0
      %435 = vmatpush2.bf16.msra.mxu0 0
      %436 = vmatprep.subr.bf16.mxu0 0
      %437 = vmatpush2.bf16.msra.mxu0 0
      %438 = vmatprep.mubr.bf16.mxu0 0
      %439 = vmatmul.mubr.bf16.gmra.mxu0 %v395
      %v440 = vpop.f32.mrf.mxu0
      %v441 = vadd.f32 0.0, %v440
      %v442 = vpop.f32.mrf.mxu0
      %v443 = vadd.f32 0.0, %v442
      %v444 = vpop.f32.mrf.mxu0
      %v445 = vpop.f32.mrf.mxu0
      %446 = vdwg.mxu0
      %447 = vmatprep.subr.bf16.mxu0 0
      %448 = vmatpush1.bf16.msra.mxu0 0
      %449 = vmatprep.subr.bf16.mxu0 0
      %450 = vmatpush1.bf16.msra.mxu0 0
      %451 = vmatprep.subr.bf16.mxu0 0
      %452 = vmatpush1.bf16.msra.mxu0 0
      %453 = vmatprep.subr.bf16.mxu0 0
      %454 = vmatpush1.bf16.msra.mxu0 0
      %455 = vmatprep.subr.bf16.mxu0 0
      %456 = vmatpush1.bf16.msra.mxu0 0
      %457 = vmatprep.subr.bf16.mxu0 0
      %458 = vmatpush1.bf16.msra.mxu0 0
      %459 = vmatprep.subr.bf16.mxu0 0
      %460 = vmatpush1.bf16.msra.mxu0 0
      %461 = vmatprep.subr.bf16.mxu0 0
      %462 = vmatpush1.bf16.msra.mxu0 %v404
      %463 = vmatprep.subr.bf16.mxu0 0
      %464 = vmatpush2.bf16.msra.mxu0 0
      %465 = vmatprep.subr.bf16.mxu0 0
      %466 = vmatpush2.bf16.msra.mxu0 0
      %467 = vmatprep.subr.bf16.mxu0 0
      %468 = vmatpush2.bf16.msra.mxu0 0
      %469 = vmatprep.subr.bf16.mxu0 0
      %470 = vmatpush2.bf16.msra.mxu0 0
      %471 = vmatprep.subr.bf16.mxu0 0
      %472 = vmatpush2.bf16.msra.mxu0 0
      %473 = vmatprep.subr.bf16.mxu0 0
      %474 = vmatpush2.bf16.msra.mxu0 0
      %475 = vmatprep.subr.bf16.mxu0 0
      %476 = vmatpush2.bf16.msra.mxu0 0
      %477 = vmatprep.subr.bf16.mxu0 0
      %478 = vmatpush2.bf16.msra.mxu0 0
      %479 = vmatprep.mubr.bf16.mxu0 0
      %480 = vmatmul.mubr.bf16.gmra.mxu0 %v395
      %v481 = vpop.f32.mrf.mxu0
      %v482 = vadd.f32 0.0, %v481
      %v483 = vpop.f32.mrf.mxu0
      %v484 = vpop.f32.mrf.mxu0
      %v485 = vpop.f32.mrf.mxu0
      %486 = vdwg.mxu0
      %v487 = vadd.f32 %v337, %v441
      %v488 = vadd.f32 %v339, %v443
      %v489 = vadd.f32 %v378, %v482
      %s490 = scalar_lea.vmem %s1, 6
      %v491 = vld [vmem:[%s490] sm:$0x3]
      %492 = vrot.lane.b32.xlu0 %v177, 110
      %v493 = vpop.permute.xlu0 %492
      %494 = vrot.lane.b32.xlu0 %v178, 110
      %v495 = vpop.permute.xlu0 %494
      %496 = vrot.lane.b32.xlu0 %v179, 110
      %v497 = vpop.permute.xlu0 %496
      %vm498 = vcmask 900096
      %v499 = vsel %vm498, %v493, %v495
      %v500 = vsel %vm498, %v495, %v497
      %v502 = vsel %vm195, %v491, 0
      %v505 = vsel %vm199, %v499, 0
      %v508 = vsel %vm199, %v500, 0
      %v511 = vsel %vm199, %v497, 0
      %513 = vmatprep.subr.bf16.mxu0 0
      %514 = vmatpush1.bf16.msra.mxu0 0
      %515 = vmatprep.subr.bf16.mxu0 0
      %516 = vmatpush1.bf16.msra.mxu0 0
      %517 = vmatprep.subr.bf16.mxu0 0
      %518 = vmatpush1.bf16.msra.mxu0 0
      %519 = vmatprep.subr.bf16.mxu0 0
      %520 = vmatpush1.bf16.msra.mxu0 0
      %521 = vmatprep.subr.bf16.mxu0 0
      %522 = vmatpush1.bf16.msra.mxu0 0
      %523 = vmatprep.subr.bf16.mxu0 0
      %524 = vmatpush1.bf16.msra.mxu0 0
      %525 = vmatprep.subr.bf16.mxu0 0
      %526 = vmatpush1.bf16.msra.mxu0 0
      %527 = vmatprep.subr.bf16.mxu0 %v508
      %528 = vmatpush1.bf16.msra.mxu0 %v505
      %529 = vmatprep.subr.bf16.mxu0 0
      %530 = vmatpush2.bf16.msra.mxu0 0
      %531 = vmatprep.subr.bf16.mxu0 0
      %532 = vmatpush2.bf16.msra.mxu0 0
      %533 = vmatprep.subr.bf16.mxu0 0
      %534 = vmatpush2.bf16.msra.mxu0 0
      %535 = vmatprep.subr.bf16.mxu0 0
      %536 = vmatpush2.bf16.msra.mxu0 0
      %537 = vmatprep.subr.bf16.mxu0 0
      %538 = vmatpush2.bf16.msra.mxu0 0
      %539 = vmatprep.subr.bf16.mxu0 0
      %540 = vmatpush2.bf16.msra.mxu0 0
      %541 = vmatprep.subr.bf16.mxu0 0
      %542 = vmatpush2.bf16.msra.mxu0 0
      %543 = vmatprep.subr.bf16.mxu0 0
      %544 = vmatpush2.bf16.msra.mxu0 0
      %545 = vmatprep.mubr.bf16.mxu0 0
      %546 = vmatmul.mubr.bf16.gmra.mxu0 %v502
      %v547 = vpop.f32.mrf.mxu0
      %v548 = vadd.f32 0.0, %v547
      %v549 = vpop.f32.mrf.mxu0
      %v550 = vadd.f32 0.0, %v549
      %v551 = vpop.f32.mrf.mxu0
      %v552 = vpop.f32.mrf.mxu0
      %553 = vdwg.mxu0
      %554 = vmatprep.subr.bf16.mxu0 0
      %555 = vmatpush1.bf16.msra.mxu0 0
      %556 = vmatprep.subr.bf16.mxu0 0
      %557 = vmatpush1.bf16.msra.mxu0 0
      %558 = vmatprep.subr.bf16.mxu0 0
      %559 = vmatpush1.bf16.msra.mxu0 0
      %560 = vmatprep.subr.bf16.mxu0 0
      %561 = vmatpush1.bf16.msra.mxu0 0
      %562 = vmatprep.subr.bf16.mxu0 0
      %563 = vmatpush1.bf16.msra.mxu0 0
      %564 = vmatprep.subr.bf16.mxu0 0
      %565 = vmatpush1.bf16.msra.mxu0 0
      %566 = vmatprep.subr.bf16.mxu0 0
      %567 = vmatpush1.bf16.msra.mxu0 0
      %568 = vmatprep.subr.bf16.mxu0 0
      %569 = vmatpush1.bf16.msra.mxu0 %v511
      %570 = vmatprep.subr.bf16.mxu0 0
      %571 = vmatpush2.bf16.msra.mxu0 0
      %572 = vmatprep.subr.bf16.mxu0 0
      %573 = vmatpush2.bf16.msra.mxu0 0
      %574 = vmatprep.subr.bf16.mxu0 0
      %575 = vmatpush2.bf16.msra.mxu0 0
      %576 = vmatprep.subr.bf16.mxu0 0
      %577 = vmatpush2.bf16.msra.mxu0 0
      %578 = vmatprep.subr.bf16.mxu0 0
      %579 = vmatpush2.bf16.msra.mxu0 0
      %580 = vmatprep.subr.bf16.mxu0 0
      %581 = vmatpush2.bf16.msra.mxu0 0
      %582 = vmatprep.subr.bf16.mxu0 0
      %583 = vmatpush2.bf16.msra.mxu0 0
      %584 = vmatprep.subr.bf16.mxu0 0
      %585 = vmatpush2.bf16.msra.mxu0 0
      %586 = vmatprep.mubr.bf16.mxu0 0
      %587 = vmatmul.mubr.bf16.gmra.mxu0 %v502
      %v588 = vpop.f32.mrf.mxu0
      %v589 = vadd.f32 0.0, %v588
      %v590 = vpop.f32.mrf.mxu0
      %v591 = vpop.f32.mrf.mxu0
      %v592 = vpop.f32.mrf.mxu0
      %593 = vdwg.mxu0
      %v594 = vadd.f32 %v487, %v548
      %v595 = vadd.f32 %v488, %v550
      %v596 = vadd.f32 %v489, %v589
      %s597 = scalar_lea.vmem %s1, 8
      %v598 = vld [vmem:[%s597] sm:$0x3]
      %599 = vrot.lane.b32.xlu0 %v177, 109
      %v600 = vpop.permute.xlu0 %599
      %601 = vrot.lane.b32.xlu0 %v178, 109
      %v602 = vpop.permute.xlu0 %601
      %603 = vrot.lane.b32.xlu0 %v179, 109
      %v604 = vpop.permute.xlu0 %603
      %vm605 = vcmask 891904
      %v606 = vsel %vm605, %v600, %v602
      %v607 = vsel %vm605, %v602, %v604
      %v609 = vsel %vm195, %v598, 0
      %v612 = vsel %vm199, %v606, 0
      %v615 = vsel %vm199, %v607, 0
      %v618 = vsel %vm199, %v604, 0
      %620 = vmatprep.subr.bf16.mxu0 0
      %621 = vmatpush1.bf16.msra.mxu0 0
      %622 = vmatprep.subr.bf16.mxu0 0
      %623 = vmatpush1.bf16.msra.mxu0 0
      %624 = vmatprep.subr.bf16.mxu0 0
      %625 = vmatpush1.bf16.msra.mxu0 0
      %626 = vmatprep.subr.bf16.mxu0 0
      %627 = vmatpush1.bf16.msra.mxu0 0
      %628 = vmatprep.subr.bf16.mxu0 0
      %629 = vmatpush1.bf16.msra.mxu0 0
      %630 = vmatprep.subr.bf16.mxu0 0
      %631 = vmatpush1.bf16.msra.mxu0 0
      %632 = vmatprep.subr.bf16.mxu0 0
      %633 = vmatpush1.bf16.msra.mxu0 0
      %634 = vmatprep.subr.bf16.mxu0 %v615
      %635 = vmatpush1.bf16.msra.mxu0 %v612
      %636 = vmatprep.subr.bf16.mxu0 0
      %637 = vmatpush2.bf16.msra.mxu0 0
      %638 = vmatprep.subr.bf16.mxu0 0
      %639 = vmatpush2.bf16.msra.mxu0 0
      %640 = vmatprep.subr.bf16.mxu0 0
      %641 = vmatpush2.bf16.msra.mxu0 0
      %642 = vmatprep.subr.bf16.mxu0 0
      %643 = vmatpush2.bf16.msra.mxu0 0
      %644 = vmatprep.subr.bf16.mxu0 0
      %645 = vmatpush2.bf16.msra.mxu0 0
      %646 = vmatprep.subr.bf16.mxu0 0
      %647 = vmatpush2.bf16.msra.mxu0 0
      %648 = vmatprep.subr.bf16.mxu0 0
      %649 = vmatpush2.bf16.msra.mxu0 0
      %650 = vmatprep.subr.bf16.mxu0 0
      %651 = vmatpush2.bf16.msra.mxu0 0
      %652 = vmatprep.mubr.bf16.mxu0 0
      %653 = vmatmul.mubr.bf16.gmra.mxu0 %v609
      %v654 = vpop.f32.mrf.mxu0
      %v655 = vadd.f32 0.0, %v654
      %v656 = vpop.f32.mrf.mxu0
      %v657 = vadd.f32 0.0, %v656
      %v658 = vpop.f32.mrf.mxu0
      %v659 = vpop.f32.mrf.mxu0
      %660 = vdwg.mxu0
      %661 = vmatprep.subr.bf16.mxu0 0
      %662 = vmatpush1.bf16.msra.mxu0 0
      %663 = vmatprep.subr.bf16.mxu0 0
      %664 = vmatpush1.bf16.msra.mxu0 0
      %665 = vmatprep.subr.bf16.mxu0 0
      %666 = vmatpush1.bf16.msra.mxu0 0
      %667 = vmatprep.subr.bf16.mxu0 0
      %668 = vmatpush1.bf16.msra.mxu0 0
      %669 = vmatprep.subr.bf16.mxu0 0
      %670 = vmatpush1.bf16.msra.mxu0 0
      %671 = vmatprep.subr.bf16.mxu0 0
      %672 = vmatpush1.bf16.msra.mxu0 0
      %673 = vmatprep.subr.bf16.mxu0 0
      %674 = vmatpush1.bf16.msra.mxu0 0
      %675 = vmatprep.subr.bf16.mxu0 0
      %676 = vmatpush1.bf16.msra.mxu0 %v618
      %677 = vmatprep.subr.bf16.mxu0 0
      %678 = vmatpush2.bf16.msra.mxu0 0
      %679 = vmatprep.subr.bf16.mxu0 0
      %680 = vmatpush2.bf16.msra.mxu0 0
      %681 = vmatprep.subr.bf16.mxu0 0
      %682 = vmatpush2.bf16.msra.mxu0 0
      %683 = vmatprep.subr.bf16.mxu0 0
      %684 = vmatpush2.bf16.msra.mxu0 0
      %685 = vmatprep.subr.bf16.mxu0 0
      %686 = vmatpush2.bf16.msra.mxu0 0
      %687 = vmatprep.subr.bf16.mxu0 0
      %688 = vmatpush2.bf16.msra.mxu0 0
      %689 = vmatprep.subr.bf16.mxu0 0
      %690 = vmatpush2.bf16.msra.mxu0 0
      %691 = vmatprep.subr.bf16.mxu0 0
      %692 = vmatpush2.bf16.msra.mxu0 0
      %693 = vmatprep.mubr.bf16.mxu0 0
      %694 = vmatmul.mubr.bf16.gmra.mxu0 %v609
      %v695 = vpop.f32.mrf.mxu0
      %v696 = vadd.f32 0.0, %v695
      %v697 = vpop.f32.mrf.mxu0
      %v698 = vpop.f32.mrf.mxu0
      %v699 = vpop.f32.mrf.mxu0
      %700 = vdwg.mxu0
      %v701 = vadd.f32 %v594, %v655
      %v702 = vadd.f32 %v595, %v657
      %v703 = vadd.f32 %v596, %v696
      %s704 = scalar_lea.vmem %s1, 10
      %v705 = vld [vmem:[%s704] sm:$0x3]
      %706 = vrot.lane.b32.xlu0 %v177, 108
      %v707 = vpop.permute.xlu0 %706
      %708 = vrot.lane.b32.xlu0 %v178, 108
      %v709 = vpop.permute.xlu0 %708
      %710 = vrot.lane.b32.xlu0 %v179, 108
      %v711 = vpop.permute.xlu0 %710
      %vm712 = vcmask 883712
      %v713 = vsel %vm712, %v707, %v709
      %v714 = vsel %vm712, %v709, %v711
      %v716 = vsel %vm195, %v705, 0
      %v719 = vsel %vm199, %v713, 0
      %v722 = vsel %vm199, %v714, 0
      %v725 = vsel %vm199, %v711, 0
      %727 = vmatprep.subr.bf16.mxu0 0
      %728 = vmatpush1.bf16.msra.mxu0 0
      %729 = vmatprep.subr.bf16.mxu0 0
      %730 = vmatpush1.bf16.msra.mxu0 0
      %731 = vmatprep.subr.bf16.mxu0 0
      %732 = vmatpush1.bf16.msra.mxu0 0
      %733 = vmatprep.subr.bf16.mxu0 0
      %734 = vmatpush1.bf16.msra.mxu0 0
      %735 = vmatprep.subr.bf16.mxu0 0
      %736 = vmatpush1.bf16.msra.mxu0 0
      %737 = vmatprep.subr.bf16.mxu0 0
      %738 = vmatpush1.bf16.msra.mxu0 0
      %739 = vmatprep.subr.bf16.mxu0 0
      %740 = vmatpush1.bf16.msra.mxu0 0
      %741 = vmatprep.subr.bf16.mxu0 %v722
      %742 = vmatpush1.bf16.msra.mxu0 %v719
      %743 = vmatprep.subr.bf16.mxu0 0
      %744 = vmatpush2.bf16.msra.mxu0 0
      %745 = vmatprep.subr.bf16.mxu0 0
      %746 = vmatpush2.bf16.msra.mxu0 0
      %747 = vmatprep.subr.bf16.mxu0 0
      %748 = vmatpush2.bf16.msra.mxu0 0
      %749 = vmatprep.subr.bf16.mxu0 0
      %750 = vmatpush2.bf16.msra.mxu0 0
      %751 = vmatprep.subr.bf16.mxu0 0
      %752 = vmatpush2.bf16.msra.mxu0 0
      %753 = vmatprep.subr.bf16.mxu0 0
      %754 = vmatpush2.bf16.msra.mxu0 0
      %755 = vmatprep.subr.bf16.mxu0 0
      %756 = vmatpush2.bf16.msra.mxu0 0
      %757 = vmatprep.subr.bf16.mxu0 0
      %758 = vmatpush2.bf16.msra.mxu0 0
      %759 = vmatprep.mubr.bf16.mxu0 0
      %760 = vmatmul.mubr.bf16.gmra.mxu0 %v716
      %v761 = vpop.f32.mrf.mxu0
      %v762 = vadd.f32 0.0, %v761
      %v763 = vpop.f32.mrf.mxu0
      %v764 = vadd.f32 0.0, %v763
      %v765 = vpop.f32.mrf.mxu0
      %v766 = vpop.f32.mrf.mxu0
      %767 = vdwg.mxu0
      %768 = vmatprep.subr.bf16.mxu0 0
      %769 = vmatpush1.bf16.msra.mxu0 0
      %770 = vmatprep.subr.bf16.mxu0 0
      %771 = vmatpush1.bf16.msra.mxu0 0
      %772 = vmatprep.subr.bf16.mxu0 0
      %773 = vmatpush1.bf16.msra.mxu0 0
      %774 = vmatprep.subr.bf16.mxu0 0
      %775 = vmatpush1.bf16.msra.mxu0 0
      %776 = vmatprep.subr.bf16.mxu0 0
      %777 = vmatpush1.bf16.msra.mxu0 0
      %778 = vmatprep.subr.bf16.mxu0 0
      %779 = vmatpush1.bf16.msra.mxu0 0
      %780 = vmatprep.subr.bf16.mxu0 0
      %781 = vmatpush1.bf16.msra.mxu0 0
      %782 = vmatprep.subr.bf16.mxu0 0
      %783 = vmatpush1.bf16.msra.mxu0 %v725
      %784 = vmatprep.subr.bf16.mxu0 0
      %785 = vmatpush2.bf16.msra.mxu0 0
      %786 = vmatprep.subr.bf16.mxu0 0
      %787 = vmatpush2.bf16.msra.mxu0 0
      %788 = vmatprep.subr.bf16.mxu0 0
      %789 = vmatpush2.bf16.msra.mxu0 0
      %790 = vmatprep.subr.bf16.mxu0 0
      %791 = vmatpush2.bf16.msra.mxu0 0
      %792 = vmatprep.subr.bf16.mxu0 0
      %793 = vmatpush2.bf16.msra.mxu0 0
      %794 = vmatprep.subr.bf16.mxu0 0
      %795 = vmatpush2.bf16.msra.mxu0 0
      %796 = vmatprep.subr.bf16.mxu0 0
      %797 = vmatpush2.bf16.msra.mxu0 0
      %798 = vmatprep.subr.bf16.mxu0 0
      %799 = vmatpush2.bf16.msra.mxu0 0
      %800 = vmatprep.mubr.bf16.mxu0 0
      %801 = vmatmul.mubr.bf16.gmra.mxu0 %v716
      %v802 = vpop.f32.mrf.mxu0
      %v803 = vadd.f32 0.0, %v802
      %v804 = vpop.f32.mrf.mxu0
      %v805 = vpop.f32.mrf.mxu0
      %v806 = vpop.f32.mrf.mxu0
      %807 = vdwg.mxu0
      %v808 = vadd.f32 %v701, %v762
      %v809 = vadd.f32 %v702, %v764
      %v810 = vadd.f32 %v703, %v803
      %s811 = scalar_lea.vmem %s1, 12
      %v812 = vld [vmem:[%s811] sm:$0x3]
      %813 = vrot.lane.b32.xlu0 %v177, 92
      %v814 = vpop.permute.xlu0 %813
      %815 = vrot.lane.b32.xlu0 %v178, 92
      %v816 = vpop.permute.xlu0 %815
      %817 = vrot.lane.b32.xlu0 %v179, 92
      %v818 = vpop.permute.xlu0 %817
      %vm819 = vcmask 752640
      %v820 = vsel %vm819, %v814, %v816
      %v821 = vsel %vm819, %v816, %v818
      %v823 = vsel %vm195, %v812, 0
      %v826 = vsel %vm199, %v820, 0
      %v829 = vsel %vm199, %v821, 0
      %v832 = vsel %vm199, %v818, 0
      %834 = vmatprep.subr.bf16.mxu0 0
      %835 = vmatpush1.bf16.msra.mxu0 0
      %836 = vmatprep.subr.bf16.mxu0 0
      %837 = vmatpush1.bf16.msra.mxu0 0
      %838 = vmatprep.subr.bf16.mxu0 0
      %839 = vmatpush1.bf16.msra.mxu0 0
      %840 = vmatprep.subr.bf16.mxu0 0
      %841 = vmatpush1.bf16.msra.mxu0 0
      %842 = vmatprep.subr.bf16.mxu0 0
      %843 = vmatpush1.bf16.msra.mxu0 0
      %844 = vmatprep.subr.bf16.mxu0 0
      %845 = vmatpush1.bf16.msra.mxu0 0
      %846 = vmatprep.subr.bf16.mxu0 0
      %847 = vmatpush1.bf16.msra.mxu0 0
      %848 = vmatprep.subr.bf16.mxu0 %v829
      %849 = vmatpush1.bf16.msra.mxu0 %v826
      %850 = vmatprep.subr.bf16.mxu0 0
      %851 = vmatpush2.bf16.msra.mxu0 0
      %852 = vmatprep.subr.bf16.mxu0 0
      %853 = vmatpush2.bf16.msra.mxu0 0
      %854 = vmatprep.subr.bf16.mxu0 0
      %855 = vmatpush2.bf16.msra.mxu0 0
      %856 = vmatprep.subr.bf16.mxu0 0
      %857 = vmatpush2.bf16.msra.mxu0 0
      %858 = vmatprep.subr.bf16.mxu0 0
      %859 = vmatpush2.bf16.msra.mxu0 0
      %860 = vmatprep.subr.bf16.mxu0 0
      %861 = vmatpush2.bf16.msra.mxu0 0
      %862 = vmatprep.subr.bf16.mxu0 0
      %863 = vmatpush2.bf16.msra.mxu0 0
      %864 = vmatprep.subr.bf16.mxu0 0
      %865 = vmatpush2.bf16.msra.mxu0 0
      %866 = vmatprep.mubr.bf16.mxu0 0
      %867 = vmatmul.mubr.bf16.gmra.mxu0 %v823
      %v868 = vpop.f32.mrf.mxu0
      %v869 = vadd.f32 0.0, %v868
      %v870 = vpop.f32.mrf.mxu0
      %v871 = vadd.f32 0.0, %v870
      %v872 = vpop.f32.mrf.mxu0
      %v873 = vpop.f32.mrf.mxu0
      %874 = vdwg.mxu0
      %875 = vmatprep.subr.bf16.mxu0 0
      %876 = vmatpush1.bf16.msra.mxu0 0
      %877 = vmatprep.subr.bf16.mxu0 0
      %878 = vmatpush1.bf16.msra.mxu0 0
      %879 = vmatprep.subr.bf16.mxu0 0
      %880 = vmatpush1.bf16.msra.mxu0 0
      %881 = vmatprep.subr.bf16.mxu0 0
      %882 = vmatpush1.bf16.msra.mxu0 0
      %883 = vmatprep.subr.bf16.mxu0 0
      %884 = vmatpush1.bf16.msra.mxu0 0
      %885 = vmatprep.subr.bf16.mxu0 0
      %886 = vmatpush1.bf16.msra.mxu0 0
      %887 = vmatprep.subr.bf16.mxu0 0
      %888 = vmatpush1.bf16.msra.mxu0 0
      %889 = vmatprep.subr.bf16.mxu0 0
      %890 = vmatpush1.bf16.msra.mxu0 %v832
      %891 = vmatprep.subr.bf16.mxu0 0
      %892 = vmatpush2.bf16.msra.mxu0 0
      %893 = vmatprep.subr.bf16.mxu0 0
      %894 = vmatpush2.bf16.msra.mxu0 0
      %895 = vmatprep.subr.bf16.mxu0 0
      %896 = vmatpush2.bf16.msra.mxu0 0
      %897 = vmatprep.subr.bf16.mxu0 0
      %898 = vmatpush2.bf16.msra.mxu0 0
      %899 = vmatprep.subr.bf16.mxu0 0
      %900 = vmatpush2.bf16.msra.mxu0 0
      %901 = vmatprep.subr.bf16.mxu0 0
      %902 = vmatpush2.bf16.msra.mxu0 0
      %903 = vmatprep.subr.bf16.mxu0 0
      %904 = vmatpush2.bf16.msra.mxu0 0
      %905 = vmatprep.subr.bf16.mxu0 0
      %906 = vmatpush2.bf16.msra.mxu0 0
      %907 = vmatprep.mubr.bf16.mxu0 0
      %908 = vmatmul.mubr.bf16.gmra.mxu0 %v823
      %v909 = vpop.f32.mrf.mxu0
      %v910 = vadd.f32 0.0, %v909
      %v911 = vpop.f32.mrf.mxu0
      %v912 = vpop.f32.mrf.mxu0
      %v913 = vpop.f32.mrf.mxu0
      %914 = vdwg.mxu0
      %v915 = vadd.f32 %v808, %v869
      %v916 = vadd.f32 %v809, %v871
      %v917 = vadd.f32 %v810, %v910
      %s918 = scalar_lea.vmem %s1, 14
      %v919 = vld [vmem:[%s918] sm:$0x3]
      %920 = vrot.lane.b32.xlu0 %v177, 91
      %v921 = vpop.permute.xlu0 %920
      %922 = vrot.lane.b32.xlu0 %v178, 91
      %v923 = vpop.permute.xlu0 %922
      %924 = vrot.lane.b32.xlu0 %v179, 91
      %v925 = vpop.permute.xlu0 %924
      %vm926 = vcmask 744448
      %v927 = vsel %vm926, %v921, %v923
      %v928 = vsel %vm926, %v923, %v925
      %v930 = vsel %vm195, %v919, 0
      %v933 = vsel %vm199, %v927, 0
      %v936 = vsel %vm199, %v928, 0
      %v939 = vsel %vm199, %v925, 0
      %941 = vmatprep.subr.bf16.mxu0 0
      %942 = vmatpush1.bf16.msra.mxu0 0
      %943 = vmatprep.subr.bf16.mxu0 0
      %944 = vmatpush1.bf16.msra.mxu0 0
      %945 = vmatprep.subr.bf16.mxu0 0
      %946 = vmatpush1.bf16.msra.mxu0 0
      %947 = vmatprep.subr.bf16.mxu0 0
      %948 = vmatpush1.bf16.msra.mxu0 0
      %949 = vmatprep.subr.bf16.mxu0 0
      %950 = vmatpush1.bf16.msra.mxu0 0
      %951 = vmatprep.subr.bf16.mxu0 0
      %952 = vmatpush1.bf16.msra.mxu0 0
      %953 = vmatprep.subr.bf16.mxu0 0
      %954 = vmatpush1.bf16.msra.mxu0 0
      %955 = vmatprep.subr.bf16.mxu0 %v936
      %956 = vmatpush1.bf16.msra.mxu0 %v933
      %957 = vmatprep.subr.bf16.mxu0 0
      %958 = vmatpush2.bf16.msra.mxu0 0
      %959 = vmatprep.subr.bf16.mxu0 0
      %960 = vmatpush2.bf16.msra.mxu0 0
      %961 = vmatprep.subr.bf16.mxu0 0
      %962 = vmatpush2.bf16.msra.mxu0 0
      %963 = vmatprep.subr.bf16.mxu0 0
      %964 = vmatpush2.bf16.msra.mxu0 0
      %965 = vmatprep.subr.bf16.mxu0 0
      %966 = vmatpush2.bf16.msra.mxu0 0
      %967 = vmatprep.subr.bf16.mxu0 0
      %968 = vmatpush2.bf16.msra.mxu0 0
      %969 = vmatprep.subr.bf16.mxu0 0
      %970 = vmatpush2.bf16.msra.mxu0 0
      %971 = vmatprep.subr.bf16.mxu0 0
      %972 = vmatpush2.bf16.msra.mxu0 0
      %973 = vmatprep.mubr.bf16.mxu0 0
      %974 = vmatmul.mubr.bf16.gmra.mxu0 %v930
      %v975 = vpop.f32.mrf.mxu0
      %v976 = vadd.f32 0.0, %v975
      %v977 = vpop.f32.mrf.mxu0
      %v978 = vadd.f32 0.0, %v977
      %v979 = vpop.f32.mrf.mxu0
      %v980 = vpop.f32.mrf.mxu0
      %981 = vdwg.mxu0
      %982 = vmatprep.subr.bf16.mxu0 0
      %983 = vmatpush1.bf16.msra.mxu0 0
      %984 = vmatprep.subr.bf16.mxu0 0
      %985 = vmatpush1.bf16.msra.mxu0 0
      %986 = vmatprep.subr.bf16.mxu0 0
      %987 = vmatpush1.bf16.msra.mxu0 0
      %988 = vmatprep.subr.bf16.mxu0 0
      %989 = vmatpush1.bf16.msra.mxu0 0
      %990 = vmatprep.subr.bf16.mxu0 0
      %991 = vmatpush1.bf16.msra.mxu0 0
      %992 = vmatprep.subr.bf16.mxu0 0
      %993 = vmatpush1.bf16.msra.mxu0 0
      %994 = vmatprep.subr.bf16.mxu0 0
      %995 = vmatpush1.bf16.msra.mxu0 0
      %996 = vmatprep.subr.bf16.mxu0 0
      %997 = vmatpush1.bf16.msra.mxu0 %v939
      %998 = vmatprep.subr.bf16.mxu0 0
      %999 = vmatpush2.bf16.msra.mxu0 0
      %1000 = vmatprep.subr.bf16.mxu0 0
      %1001 = vmatpush2.bf16.msra.mxu0 0
      %1002 = vmatprep.subr.bf16.mxu0 0
      %1003 = vmatpush2.bf16.msra.mxu0 0
      %1004 = vmatprep.subr.bf16.mxu0 0
      %1005 = vmatpush2.bf16.msra.mxu0 0
      %1006 = vmatprep.subr.bf16.mxu0 0
      %1007 = vmatpush2.bf16.msra.mxu0 0
      %1008 = vmatprep.subr.bf16.mxu0 0
      %1009 = vmatpush2.bf16.msra.mxu0 0
      %1010 = vmatprep.subr.bf16.mxu0 0
      %1011 = vmatpush2.bf16.msra.mxu0 0
      %1012 = vmatprep.subr.bf16.mxu0 0
      %1013 = vmatpush2.bf16.msra.mxu0 0
      %1014 = vmatprep.mubr.bf16.mxu0 0
      %1015 = vmatmul.mubr.bf16.gmra.mxu0 %v930
      %v1016 = vpop.f32.mrf.mxu0
      %v1017 = vadd.f32 0.0, %v1016
      %v1018 = vpop.f32.mrf.mxu0
      %v1019 = vpop.f32.mrf.mxu0
      %v1020 = vpop.f32.mrf.mxu0
      %1021 = vdwg.mxu0
      %v1022 = vadd.f32 %v915, %v976
      %v1023 = vadd.f32 %v916, %v978
      %v1024 = vadd.f32 %v917, %v1017
      %s1025 = scalar_lea.vmem %s1, 16
      %v1026 = vld [vmem:[%s1025] sm:$0x3]
      %1027 = vrot.lane.b32.xlu0 %v177, 90
      %v1028 = vpop.permute.xlu0 %1027
      %1029 = vrot.lane.b32.xlu0 %v178, 90
      %v1030 = vpop.permute.xlu0 %1029
      %1031 = vrot.lane.b32.xlu0 %v179, 90
      %v1032 = vpop.permute.xlu0 %1031
      %vm1033 = vcmask 736256
      %v1034 = vsel %vm1033, %v1028, %v1030
      %v1035 = vsel %vm1033, %v1030, %v1032
      %v1037 = vsel %vm195, %v1026, 0
      %v1040 = vsel %vm199, %v1034, 0
      %v1043 = vsel %vm199, %v1035, 0
      %v1046 = vsel %vm199, %v1032, 0
      %1048 = vmatprep.subr.bf16.mxu0 0
      %1049 = vmatpush1.bf16.msra.mxu0 0
      %1050 = vmatprep.subr.bf16.mxu0 0
      %1051 = vmatpush1.bf16.msra.mxu0 0
      %1052 = vmatprep.subr.bf16.mxu0 0
      %1053 = vmatpush1.bf16.msra.mxu0 0
      %1054 = vmatprep.subr.bf16.mxu0 0
      %1055 = vmatpush1.bf16.msra.mxu0 0
      %1056 = vmatprep.subr.bf16.mxu0 0
      %1057 = vmatpush1.bf16.msra.mxu0 0
      %1058 = vmatprep.subr.bf16.mxu0 0
      %1059 = vmatpush1.bf16.msra.mxu0 0
      %1060 = vmatprep.subr.bf16.mxu0 0
      %1061 = vmatpush1.bf16.msra.mxu0 0
      %1062 = vmatprep.subr.bf16.mxu0 %v1043
      %1063 = vmatpush1.bf16.msra.mxu0 %v1040
      %1064 = vmatprep.subr.bf16.mxu0 0
      %1065 = vmatpush2.bf16.msra.mxu0 0
      %1066 = vmatprep.subr.bf16.mxu0 0
      %1067 = vmatpush2.bf16.msra.mxu0 0
      %1068 = vmatprep.subr.bf16.mxu0 0
      %1069 = vmatpush2.bf16.msra.mxu0 0
      %1070 = vmatprep.subr.bf16.mxu0 0
      %1071 = vmatpush2.bf16.msra.mxu0 0
      %1072 = vmatprep.subr.bf16.mxu0 0
      %1073 = vmatpush2.bf16.msra.mxu0 0
      %1074 = vmatprep.subr.bf16.mxu0 0
      %1075 = vmatpush2.bf16.msra.mxu0 0
      %1076 = vmatprep.subr.bf16.mxu0 0
      %1077 = vmatpush2.bf16.msra.mxu0 0
      %1078 = vmatprep.subr.bf16.mxu0 0
      %1079 = vmatpush2.bf16.msra.mxu0 0
      %1080 = vmatprep.mubr.bf16.mxu0 0
      %1081 = vmatmul.mubr.bf16.gmra.mxu0 %v1037
      %v1082 = vpop.f32.mrf.mxu0
      %v1083 = vadd.f32 0.0, %v1082
      %v1084 = vpop.f32.mrf.mxu0
      %v1085 = vadd.f32 0.0, %v1084
      %v1086 = vpop.f32.mrf.mxu0
      %v1087 = vpop.f32.mrf.mxu0
      %1088 = vdwg.mxu0
      %1089 = vmatprep.subr.bf16.mxu0 0
      %1090 = vmatpush1.bf16.msra.mxu0 0
      %1091 = vmatprep.subr.bf16.mxu0 0
      %1092 = vmatpush1.bf16.msra.mxu0 0
      %1093 = vmatprep.subr.bf16.mxu0 0
      %1094 = vmatpush1.bf16.msra.mxu0 0
      %1095 = vmatprep.subr.bf16.mxu0 0
      %1096 = vmatpush1.bf16.msra.mxu0 0
      %1097 = vmatprep.subr.bf16.mxu0 0
      %1098 = vmatpush1.bf16.msra.mxu0 0
      %1099 = vmatprep.subr.bf16.mxu0 0
      %1100 = vmatpush1.bf16.msra.mxu0 0
      %1101 = vmatprep.subr.bf16.mxu0 0
      %1102 = vmatpush1.bf16.msra.mxu0 0
      %1103 = vmatprep.subr.bf16.mxu0 0
      %1104 = vmatpush1.bf16.msra.mxu0 %v1046
      %1105 = vmatprep.subr.bf16.mxu0 0
      %1106 = vmatpush2.bf16.msra.mxu0 0
      %1107 = vmatprep.subr.bf16.mxu0 0
      %1108 = vmatpush2.bf16.msra.mxu0 0
      %1109 = vmatprep.subr.bf16.mxu0 0
      %1110 = vmatpush2.bf16.msra.mxu0 0
      %1111 = vmatprep.subr.bf16.mxu0 0
      %1112 = vmatpush2.bf16.msra.mxu0 0
      %1113 = vmatprep.subr.bf16.mxu0 0
      %1114 = vmatpush2.bf16.msra.mxu0 0
      %1115 = vmatprep.subr.bf16.mxu0 0
      %1116 = vmatpush2.bf16.msra.mxu0 0
      %1117 = vmatprep.subr.bf16.mxu0 0
      %1118 = vmatpush2.bf16.msra.mxu0 0
      %1119 = vmatprep.subr.bf16.mxu0 0
      %1120 = vmatpush2.bf16.msra.mxu0 0
      %1121 = vmatprep.mubr.bf16.mxu0 0
      %1122 = vmatmul.mubr.bf16.gmra.mxu0 %v1037
      %v1123 = vpop.f32.mrf.mxu0
      %v1124 = vadd.f32 0.0, %v1123
      %v1125 = vpop.f32.mrf.mxu0
      %v1126 = vpop.f32.mrf.mxu0
      %v1127 = vpop.f32.mrf.mxu0
      %1128 = vdwg.mxu0
      %v1129 = vadd.f32 %v1022, %v1083
      %v1130 = vadd.f32 %v1023, %v1085
      %v1131 = vadd.f32 %v1024, %v1124
      %v1135 = vcombine.low %v1129, %v1130
      %1136 = vrot.lane.b32.xlu0 %v1135, 19
      %v1137 = vpop.permute.xlu0 %1136
      %1138 = vrot.lane.b32.xlu0 %v1131, 19
      %v1139 = vpop.permute.xlu0 %1138
      %v1140 = vrot.slane %v1137, 4
      %vm1141 = vcmask 154624
      %v1142 = vsel %vm1141, %v1140, %v1137
      %v1143 = vsel %vm1141, %v1140, %v1139
      %v1146 = vadd.f32 %v172, %v1142
      %v1147 = vadd.f32 %v173, %v1143
      %v1148 = vld [vmem:[%s2] sm:$0xf]
      %1150 = vset.pattern.permute.xlu0 0
      %1151 = vperm.xlu0 %1150, %v1148
      %v1152 = vpop.permute.xlu0 %1151
      %v1154 = vunpack.c.l.s4 839922192
      %v1155 = vunpack.c.0.s8 %v1154
      %v1156 = vlaneseq
      %v1157 = vshrl.u32 %v1156, 7
      %v1158 = vsub.s32 %v1155, %v1157
      %v1159 = vrot.slane %v1152, %v1158
      %v1161 = vadd.f32 %v1146, %v1159
      %v1162 = vadd.f32 %v1147, %v1159
      %1165 = vrot.lane.b32.xlu0 %v1161, 109
      %v1166 = vpop.permute.xlu0 %1165
      %1167 = vrot.lane.b32.xlu0 %v1162, 109
      %v1168 = vpop.permute.xlu0 %1167
      %v1169 = vrot.slane %v1166, 4
      %v1170 = vrot.slane %v1168, 4
      %vm1171 = vcmask 1043456
      %v1172 = vsel %vm1171, %v1169, %v1170
      %vm1173 = vcmask 891904
      %v1174 = vsel %vm1173, %v1166, %v1172
      %1177 = vst [vmem:[%s170] sm:$0xff] %v1174
      %vm1178 = vcmask 257024
      %1179 = vst.msk [vmem:[%s170 + $0x8] sm:$0xf] %vm1178, %v1168
      %p1180 = scmp.lt.s32.totalorder %s14, 1
      %s1181 = scalar_select %p1180, %s14, 1
      %s1182 = smul.addr %s1181, 3
      %s1183 = smul.addr %s1182, 4
      %s1184 = scalar_lea.vmem %s3, %s1183
      // Predicated region
      $region33: #{resblock_forward.1} parent=31 // pred_check
        %p1185 = pneg %p100
      $region34: #{resblock_forward.1} parent=31 // pred_check_branch
        %1187 = sbr.rel (%p1185) target = $region36
      $region35: #{resblock_forward.1} parent=31 // pred_region
        _
      $region36: #{resblock_forward.1} parent=31 // pred_fallthru
        _
    $region32: #{resblock_forward.1} parent=5 // pred_fallthru
      _
    %p1188 = scmp.le.s32.totalorder 2, %s9
    // Predicated region
    $region37: #{resblock_forward.1} parent=5 // pred_check
      %p1189 = pneg %p1188
    $region38: #{resblock_forward.1} parent=5 // pred_check_branch
      %1191 = sbr.rel (%p1189) target = $region40
    $region39: #{resblock_forward.1} parent=5 // pred_region
      %s1192 = ssub.s32 %s9, 2
      // Predicated region
      $region41: #{resblock_forward.1} parent=39 // pred_check
        %p1193 = pneg %p106
      $region42: #{resblock_forward.1} parent=39 // pred_check_branch
        %1195 = sbr.rel (%p1193) target = $region44
      $region43: #{resblock_forward.1} parent=39 // pred_region
        %p1196 = scmp.lt.s32.totalorder %s15, 1
        %s1197 = scalar_select %p1196, %s15, 1
        %s1198 = smul.addr %s1197, 3
        %s1199 = smul.addr %s1198, 4
        %s1200 = scalar_lea.vmem %s3, %s1199
      $region44: #{resblock_forward.1} parent=39 // pred_fallthru
        _
    $region40: #{resblock_forward.1} parent=5 // pred_fallthru
      _
  $region6: #{resblock_forward.1} parent=0 // loop_footer
    %s13 = sadd.s32 1, %s9
  $region7: #{resblock_forward.1} parent=0 // loop_footer_branch
    %8 = sbr.rel target = $region3
  $region8: #{resblock_forward.1} parent=0 // loop_exit
    _

</llo_original>
